<compile_context>
chip_gen: v7x
topology: tpu7x:2x2x1
jax: 0.10.0
libtpu: 0.0.40
codegen_flags: <defaults>
</compile_context>

<pallas_src>
import functools

import jax
import jax.numpy as jnp
from jax.experimental import pallas as pl
from jax.experimental.pallas import tpu as pltpu


def _round_up(a: int, b: int) -> int:
    return (a + b - 1) // b * b


def _bn_stats_kernel(x_ref, sum_ref, sq_ref, *, tile_r, tiles_per_part, rows,
                     needs_mask):
    """Accumulate per-feature sum / sum(x^2) into resident (8, C) output
    blocks (one pair per partition).  The 8->1 sublane collapse is done
    host-side on a tiny (num_parts*8, C) array."""
    p = pl.program_id(0)
    i = pl.program_id(1)

    @pl.when(i == 0)
    def _():
        sum_ref[...] = jnp.zeros_like(sum_ref)
        sq_ref[...] = jnp.zeros_like(sq_ref)

    x = x_ref[...].astype(jnp.float32)
    if needs_mask:
        # Zero out rows past the true row count: covers the partial last tile
        # and any redundant (index-clamped) trailing grid slots.
        row_start = (p * tiles_per_part + i) * tile_r
        row_ids = jax.lax.broadcasted_iota(jnp.int32, x.shape, 0)
        x = jnp.where(row_ids < rows - row_start, x, 0.0)

    # Regroup rows into complete (8, C) sublane groups; the axis-0 reduction is
    # then vreg-aligned VPU adds (no cross-sublane XLU work per step).
    xg = x.reshape(tile_r // 8, 8, x.shape[-1])
    sum_ref[...] += jnp.sum(xg, axis=0)
    sq_ref[...] += jnp.sum(xg * xg, axis=0)


def _bn_apply_kernel(x_ref, scale_ref, shift_ref, o_ref):
    """y = x * scale + shift for one row tile (scale/shift precomputed)."""
    x = x_ref[...].astype(jnp.float32)
    o_ref[...] = (x * scale_ref[...] + shift_ref[...]).astype(o_ref.dtype)


def batchnorm_transformer_forward(x, weight, bias, running_mean, running_var,
                                  *, eps=1e-5, momentum=0.1, training=True,
                                  block_rows=None):
    """Forward pass of BatchNormTransformer.

    x: (batch, seq, hidden); weight/bias/running_*: (hidden,)
    Returns (y, new_running_mean, new_running_var).
    """
    B, S, C = x.shape
    rows = B * S
    dtype = x.dtype
    itemsize = jnp.dtype(dtype).itemsize

    # ~4 MiB x-blocks: pass-2 footprint (2x in + 2x out blocks) ~= 16 MiB,
    # safely below the explicit 32 MiB scoped-VMEM limit on v5e/v6e/v7x.
    target_block_bytes = 4 * 1024 * 1024
    if block_rows is None:
        tile_r = max(8, (target_block_bytes // max(1, C * itemsize)) // 8 * 8)
    else:
        tile_r = max(8, block_rows // 8 * 8)
    tile_r = min(tile_r, _round_up(rows, 8))

    n_tiles = pl.cdiv(rows, tile_r)
    # Two independent partial accumulations on a leading "parallel" axis so
    # the reduction uses both TensorCores on v7x (harmless on v5e/v6e).
    num_parts = 2 if n_tiles >= 2 else 1
    tiles_per_part = pl.cdiv(n_tiles, num_parts)
    total_slots = num_parts * tiles_per_part
    needs_mask = (rows != n_tiles * tile_r) or (total_slots != n_tiles)

    x2 = x.reshape(rows, C)  # free metadata reshape — no pad, no extra HBM copy

    vmem_limit = 32 * 1024 * 1024

    if training:
        if total_slots != n_tiles:
            def x_stats_map(p, i):
                # Clamp redundant trailing slots onto the last real tile; their
                # contribution is zeroed by the in-kernel row mask.
                return (jnp.minimum(p * tiles_per_part + i, n_tiles - 1), 0)
        else:
            def x_stats_map(p, i):
                return (p * tiles_per_part + i, 0)

        part_spec = pl.BlockSpec((8, C), lambda p, i: (p, 0))

        sum_p, sq_p = pl.pallas_call(
            functools.partial(_bn_stats_kernel, tile_r=tile_r,
                              tiles_per_part=tiles_per_part, rows=rows,
                              needs_mask=needs_mask),
            out_shape=(jax.ShapeDtypeStruct((num_parts * 8, C), jnp.float32),
                       jax.ShapeDtypeStruct((num_parts * 8, C), jnp.float32)),
            grid_spec=pltpu.PrefetchScalarGridSpec(
                num_scalar_prefetch=0,
                grid=(num_parts, tiles_per_part),
                in_specs=[pl.BlockSpec((tile_r, C), x_stats_map)],
                out_specs=(part_spec, part_spec),
            ),
            compiler_params=pltpu.CompilerParams(
                dimension_semantics=("parallel", "arbitrary"),
                vmem_limit_bytes=vmem_limit),
            cost_estimate=pl.CostEstimate(
                flops=int(3 * rows * C), transcendentals=0,
                bytes_accessed=int(rows * C * itemsize + 2 * num_parts * 8 * C * 4)),
        )(x2)

        # Tiny (C,)-vector finalize outside the kernel.
        total_sum = jnp.sum(sum_p, axis=0)
        total_sq = jnp.sum(sq_p, axis=0)
        mean = total_sum / rows
        # TODO(synk): E[x^2]-E[x]^2 can cancel when |mean| >> std; a shifted or
        # Welford-style accumulation would be more robust for such inputs.
        var = jnp.maximum(total_sq / rows - mean * mean, 0.0)

        # Buffer side effects done functionally.  NOTE: this module updates
        # running_var with the *biased* (population) variance, matching here.
        new_running_mean = (1.0 - momentum) * running_mean + momentum * mean
        new_running_var = (1.0 - momentum) * running_var + momentum * var
    else:
        mean = running_mean.astype(jnp.float32)
        var = running_var.astype(jnp.float32)
        new_running_mean = running_mean
        new_running_var = running_var

    # Fold the affine into two (1, C) vectors so pass 2 is a single FMA + cast.
    inv_std = 1.0 / jnp.sqrt(var + eps)
    scale = (weight.astype(jnp.float32) * inv_std).reshape(1, C)
    shift = bias.astype(jnp.float32).reshape(1, C) - mean.reshape(1, C) * scale

    row_spec = pl.BlockSpec((tile_r, C), lambda i: (i, 0))
    vec_spec = pl.BlockSpec((1, C), lambda i: (0, 0))

    out = pl.pallas_call(
        _bn_apply_kernel,
        out_shape=jax.ShapeDtypeStruct((rows, C), dtype),
        grid_spec=pltpu.PrefetchScalarGridSpec(
            num_scalar_prefetch=0,
            grid=(n_tiles,),
            in_specs=[row_spec, vec_spec, vec_spec],
            out_specs=row_spec,
        ),
        compiler_params=pltpu.CompilerParams(
            dimension_semantics=("parallel",),
            vmem_limit_bytes=vmem_limit),
        cost_estimate=pl.CostEstimate(
            flops=int(2 * rows * C), transcendentals=0,
            bytes_accessed=int(2 * rows * C * itemsize + 2 * C * 4)),
    )(x2, scale, shift)

    y = out.reshape(B, S, C)
    return y, new_running_mean, new_running_var


def _reference(x, weight, bias, running_mean, running_var, eps, momentum,
               training):
    if training:
        mean = x.mean(axis=(0, 1))
        var = x.var(axis=(0, 1))  # ddof=0 == unbiased=False
        rm = (1.0 - momentum) * running_mean + momentum * mean
        rv = (1.0 - momentum) * running_var + momentum * var
    else:
        mean, var = running_mean, running_var
        rm, rv = running_mean, running_var
    y = (x - mean) / jnp.sqrt(var + eps) * weight + bias
    return y, rm, rv


if __name__ == "__main__":
    key = jax.random.PRNGKey(0)
    kx, kw, kb, kx2 = jax.random.split(key, 4)

    batch, seq, hidden = 2, 8, 32
    eps, momentum = 1e-5, 0.1

    x = jax.random.normal(kx, (batch, seq, hidden), dtype=jnp.float32)
    weight = 1.0 + 0.1 * jax.random.normal(kw, (hidden,), dtype=jnp.float32)
    bias = 0.1 * jax.random.normal(kb, (hidden,), dtype=jnp.float32)
    running_mean = jnp.zeros((hidden,), dtype=jnp.float32)
    running_var = jnp.ones((hidden,), dtype=jnp.float32)

    # Training-mode forward (matches module default self.training = True).
    y, new_rm, new_rv = batchnorm_transformer_forward(
        x, weight, bias, running_mean, running_var,
        eps=eps, momentum=momentum, training=True)
    y = jax.block_until_ready(y)

    y_ref, rm_ref, rv_ref = _reference(
        x, weight, bias, running_mean, running_var, eps, momentum, True)
    assert y.shape == x.shape
    assert jnp.allclose(y, y_ref, atol=1e-5, rtol=1e-5)
    assert jnp.allclose(new_rm, rm_ref, atol=1e-6, rtol=1e-6)
    assert jnp.allclose(new_rv, rv_ref, atol=1e-5, rtol=1e-5)

    # Eval-mode forward using running statistics.
    y_eval, _, _ = batchnorm_transformer_forward(
        x, weight, bias, new_rm, new_rv,
        eps=eps, momentum=momentum, training=False)
    y_eval = jax.block_until_ready(y_eval)
    y_eval_ref, _, _ = _reference(
        x, weight, bias, new_rm, new_rv, eps, momentum, False)
    assert jnp.allclose(y_eval, y_eval_ref, atol=1e-5, rtol=1e-5)

    # Exercise the ragged / multi-tile / two-partition path (mask + clamped
    # index map + OOB-write drop) with a forced small row tile.
    b2, s2, h2 = 3, 17, 40
    x2 = jax.random.normal(kx2, (b2, s2, h2), dtype=jnp.float32)
    w2 = jnp.ones((h2,), dtype=jnp.float32)
    bb2 = jnp.zeros((h2,), dtype=jnp.float32)
    rm2 = jnp.zeros((h2,), dtype=jnp.float32)
    rv2 = jnp.ones((h2,), dtype=jnp.float32)
    y2, nrm2, nrv2 = batchnorm_transformer_forward(
        x2, w2, bb2, rm2, rv2, eps=eps, momentum=momentum, training=True,
        block_rows=8)
    y2 = jax.block_until_ready(y2)
    y2_ref, rm2_ref, rv2_ref = _reference(
        x2, w2, bb2, rm2, rv2, eps, momentum, True)
    assert jnp.allclose(y2, y2_ref, atol=1e-5, rtol=1e-5)
    assert jnp.allclose(nrm2, rm2_ref, atol=1e-5, rtol=1e-5)
    assert jnp.allclose(nrv2, rv2_ref, atol=1e-5, rtol=1e-5)

    print("KERNEL_OK")
</pallas_src>

<mosaic_0001>
module attributes {stable_mosaic.version = 11 : i64} {
  func.func @_bn_stats_kernel(%arg0: i32, %arg1: i32, %arg2: memref<16x32xf32, #tpu.memory_space<vmem>>, %arg3: memref<8x32xf32, #tpu.memory_space<vmem>>, %arg4: memref<8x32xf32, #tpu.memory_space<vmem>>) attributes {dimension_semantics = [#tpu.dimension_semantics<parallel>, #tpu.dimension_semantics<arbitrary>], iteration_bounds = array<i64: 1, 1>, scalar_prefetch = 0 : i64, scratch_operands = 0 : i64, tpu.core_type = #tpu.core_type<tc>, window_params = [{transform_indices = @transform_0, window_bounds = array<i64: 16, 32>}, {transform_indices = @transform_1, window_bounds = array<i64: 8, 32>}, {transform_indices = @transform_2, window_bounds = array<i64: 8, 32>}]} {
    %c0_i32 = arith.constant 0 : i32
    %0 = arith.cmpi eq, %arg1, %c0_i32 : i32
    %1 = arith.extui %0 : i1 to i32
    %c0_i32_0 = arith.constant 0 : i32
    %2 = arith.cmpi ne, %1, %c0_i32_0 : i32
    scf.if %2 {
      %cst_11 = arith.constant 0.000000e+00 : f32
      %14 = vector.broadcast %cst_11 : f32 to vector<8x32xf32>
      %c0_12 = arith.constant 0 : index
      %c0_13 = arith.constant 0 : index
      %15 = vector.load %arg3[%c0_12, %c0_13] : memref<8x32xf32, #tpu.memory_space<vmem>>, vector<8x32xf32>
      tpu.vector_store %arg3[%c0_12, %c0_13], %14 {strides = array<i32>} : memref<8x32xf32, #tpu.memory_space<vmem>>, vector<8x32xf32>,
      %cst_14 = arith.constant 0.000000e+00 : f32
      %16 = vector.broadcast %cst_14 : f32 to vector<8x32xf32>
      %c0_15 = arith.constant 0 : index
      %c0_16 = arith.constant 0 : index
      %17 = vector.load %arg4[%c0_15, %c0_16] : memref<8x32xf32, #tpu.memory_space<vmem>>, vector<8x32xf32>
      tpu.vector_store %arg4[%c0_15, %c0_16], %16 {strides = array<i32>} : memref<8x32xf32, #tpu.memory_space<vmem>>, vector<8x32xf32>,
    } else {
    }
    %c0 = arith.constant 0 : index
    %c0_1 = arith.constant 0 : index
    %3 = vector.load %arg2[%c0, %c0_1] : memref<16x32xf32, #tpu.memory_space<vmem>>, vector<16x32xf32>
    %4 = vector.shape_cast %3 : vector<16x32xf32> to vector<2x8x32xf32>
    %c0_2 = arith.constant 0 : index
    %c0_3 = arith.constant 0 : index
    %5 = vector.load %arg3[%c0_2, %c0_3] : memref<8x32xf32, #tpu.memory_space<vmem>>, vector<8x32xf32>
    %cst = arith.constant dense<0.000000e+00> : vector<8x32xf32>
    %6 = vector.multi_reduction <add>, %4, %cst [0] : vector<2x8x32xf32> to vector<8x32xf32>
    %7 = arith.addf %5, %6 : vector<8x32xf32>
    %c0_4 = arith.constant 0 : index
    %c0_5 = arith.constant 0 : index
    %8 = vector.load %arg3[%c0_4, %c0_5] : memref<8x32xf32, #tpu.memory_space<vmem>>, vector<8x32xf32>
    tpu.vector_store %arg3[%c0_4, %c0_5], %7 {strides = array<i32>} : memref<8x32xf32, #tpu.memory_space<vmem>>, vector<8x32xf32>,
    %c0_6 = arith.constant 0 : index
    %c0_7 = arith.constant 0 : index
    %9 = vector.load %arg4[%c0_6, %c0_7] : memref<8x32xf32, #tpu.memory_space<vmem>>, vector<8x32xf32>
    %10 = arith.mulf %4, %4 : vector<2x8x32xf32>
    %cst_8 = arith.constant dense<0.000000e+00> : vector<8x32xf32>
    %11 = vector.multi_reduction <add>, %10, %cst_8 [0] : vector<2x8x32xf32> to vector<8x32xf32>
    %12 = arith.addf %9, %11 : vector<8x32xf32>
    %c0_9 = arith.constant 0 : index
    %c0_10 = arith.constant 0 : index
    %13 = vector.load %arg4[%c0_9, %c0_10] : memref<8x32xf32, #tpu.memory_space<vmem>>, vector<8x32xf32>
    tpu.vector_store %arg4[%c0_9, %c0_10], %12 {strides = array<i32>} : memref<8x32xf32, #tpu.memory_space<vmem>>, vector<8x32xf32>,
    return
  }
  func.func @transform_0(%arg0: i32, %arg1: i32) -> (i32, i32) {
    %c1_i32 = arith.constant 1 : i32
    %0 = arith.muli %arg0, %c1_i32 : i32
    %1 = arith.addi %0, %arg1 : i32
    %c0_i32 = arith.constant 0 : i32
    %c0_i32_0 = arith.constant 0 : i32
    return %1, %c0_i32 : i32, i32
  }
  func.func @transform_1(%arg0: i32, %arg1: i32) -> (i32, i32) {
    %c0_i32 = arith.constant 0 : i32
    %c0_i32_0 = arith.constant 0 : i32
    return %arg0, %c0_i32 : i32, i32
  }
  func.func @transform_2(%arg0: i32, %arg1: i32) -> (i32, i32) {
    %c0_i32 = arith.constant 0 : i32
    %c0_i32_0 = arith.constant 0 : i32
    return %arg0, %c0_i32 : i32, i32
  }
}

</mosaic_0001>

<llo_original>
// kernel: tpu_custom_call.1
$region0: #{tpu_custom_call.1}
  #allocation0 [shape = 'u32[]', space=smem, size = 0x4, offset = 0x4, fixed_abs, tag = 'smem constant byte address 0x4 - core index']
  #allocation1 [shape = 'u32[144,128]{1,0:T(1,128)}', space=vmem, size = 0x12000, scoped, tag = 'internal scratch']
  %s0 = inlined_call_operand.hbm [shape: f32[16,32], index: 0, kind: input, shape index: {}]
  %s1 = inlined_call_operand.hbm [shape: f32[8,32], index: 1, kind: output, shape index: {0}]
  %s2 = inlined_call_operand.hbm [shape: f32[8,32], index: 2, kind: output, shape index: {1}]
  %3 = xla_tuple %s1, %s2
  %s4 = sld [smem:[#allocation0]]
  $region30: #{tpu_custom_call.1} parent=0
    _
  %s6 = ssub.s32 1, %s4
  %s7 = scalar_select 0, %s6, %s4
  $region1: #{tpu_custom_call.1} parent=0
    #allocation2 [shape = 'u8[8192]{0}', space=vmem, size = 0x2000, scoped, tag = 'input window, operand 0, single buffered']
    #allocation3 [shape = 's32[1]{0}', space=sflag, size = 0x4, scoped, tag = 'scoped memory for tpu_custom_call.1']
    #allocation4 [shape = 's32[1]{0}', space=sflag, size = 0x4, scoped, tag = 'scoped memory for tpu_custom_call.1']
    #allocation5 [shape = 'u8[4096]{0}', space=vmem, size = 0x1000, scoped, tag = 'output window, operand 0, single buffered']
    #allocation6 [shape = 'u8[4096]{0}', space=vmem, size = 0x1000, scoped, tag = 'output window, operand 1, single buffered']
    #allocation7 [shape = 's32[1]{0}', space=sflag, size = 0x4, scoped, tag = 'scoped memory for tpu_custom_call.1']
    %8 = vsyncpa [#allocation3], 0
    %9 = vsyncpa [#allocation4], 0
    %10 = vsyncpa [#allocation7], 0
    // Predicated region
    $region2: #{tpu_custom_call.1} parent=1 // pred_check
      _
    $region3: #{tpu_custom_call.1} parent=1 // pred_check_branch
      %12 = sbr.rel (0) target = $region5
    $region4: #{tpu_custom_call.1} parent=1 // pred_region
      %s13 = sadd.s32 0, 0
      %s14 = smul.u32 2, %s13
      %s16 = ssub.s32 256, 256
      %17 = vsyncadd [#allocation3], %s16
      %s18 = smul.addr %s14, 128
      %s19 = scalar_lea.hbm %s0, %s18
      %s20 = sshll.u32 [#allocation2], 4
      %s21 = int_to_ptr.vmem [resolvable:$true] %s20
      %26 = dma.hbm_to_vmem [thread:$0]  %s19, 256, %s21, [#allocation3], 128, 128, 8
    $region5: #{tpu_custom_call.1} parent=1 // pred_fallthru
      _
    // Predicated region
    $region6: #{tpu_custom_call.1} parent=1 // pred_check
      _
    $region7: #{tpu_custom_call.1} parent=1 // pred_check_branch
      %28 = sbr.rel (0) target = $region9
    $region8: #{tpu_custom_call.1} parent=1 // pred_region
      %29 = dma.done [#allocation3], 256
    $region9: #{tpu_custom_call.1} parent=1 // pred_fallthru
      _
    %s30 = sadd.s32 0, 0
    %s31 = smul.u32 2, %s30
    %p32 = scmp.eq.s32.totalorder 0, 0
    // Predicated region
    $region10: #{tpu_custom_call.1} parent=1 // pred_check
      %p33 = pneg %p32
    $region11: #{tpu_custom_call.1} parent=1 // pred_check_branch
      %35 = sbr.rel (%p33) target = $region13
    $region12: #{tpu_custom_call.1} parent=1 // pred_region
      %vm36 = vcmask 261120
      %37 = vst.msk [vmem:[#allocation5] sm:$0xff] %vm36, 0.0
      %38 = vst.msk [vmem:[#allocation6] sm:$0xff] %vm36, 0.0
    $region13: #{tpu_custom_call.1} parent=1 // pred_fallthru
      _
    %v39 = vld [vmem:[#allocation2] sm:$0xff]
    %v40 = vld [vmem:[#allocation2 + $0x8] sm:$0xff]
    %v41 = vld [vmem:[#allocation5] sm:$0xff]
    %vm42 = vcmask 261120
    %v43 = vsel %vm42, %v39, 0.0
    %v44 = vsel %vm42, %v40, 0.0
    %v45 = vadd.f32 %v43, %v44
    %v46 = vadd.f32 %v41, %v45
    %47 = vst.msk [vmem:[#allocation5] sm:$0xff] %vm42, %v46
    %v48 = vld [vmem:[#allocation6] sm:$0xff]
    %v49 = vmul.f32 %v39, %v39
    %v50 = vmul.f32 %v40, %v40
    %v51 = vsel %vm42, %v49, 0.0
    %v52 = vsel %vm42, %v50, 0.0
    %v53 = vadd.f32 %v51, %v52
    %v54 = vadd.f32 %v48, %v53
    %55 = vst.msk [vmem:[#allocation6] sm:$0xff] %vm42, %v54
    // Predicated region
    $region14: #{tpu_custom_call.1} parent=1 // pred_check
      _
    $region15: #{tpu_custom_call.1} parent=1 // pred_check_branch
      %57 = sbr.rel (0) target = $region17
    $region16: #{tpu_custom_call.1} parent=1 // pred_region
      %s59 = ssub.s32 128, 128
      %60 = vsyncadd [#allocation4], %s59
      %s62 = sshll.u32 [#allocation5], 4
      %s63 = int_to_ptr.vmem [resolvable:$true] %s62
      %65 = dma.vmem_to_hbm [thread:$0]  %s63, 128, %s1, [#allocation4]
    $region17: #{tpu_custom_call.1} parent=1 // pred_fallthru
      _
    // Predicated region
    $region18: #{tpu_custom_call.1} parent=1 // pred_check
      _
    $region19: #{tpu_custom_call.1} parent=1 // pred_check_branch
      %67 = sbr.rel (0) target = $region21
    $region20: #{tpu_custom_call.1} parent=1 // pred_region
      %s69 = ssub.s32 128, 128
      %70 = vsyncadd [#allocation7], %s69
      %s72 = sshll.u32 [#allocation6], 4
      %s73 = int_to_ptr.vmem [resolvable:$true] %s72
      %75 = dma.vmem_to_hbm [thread:$0]  %s73, 128, %s2, [#allocation7]
    $region21: #{tpu_custom_call.1} parent=1 // pred_fallthru
      _
    // Predicated region
    $region22: #{tpu_custom_call.1} parent=1 // pred_check
      _
    $region23: #{tpu_custom_call.1} parent=1 // pred_check_branch
      %77 = sbr.rel (0) target = $region25
    $region24: #{tpu_custom_call.1} parent=1 // pred_region
      %78 = dma.done [#allocation4], 128
    $region25: #{tpu_custom_call.1} parent=1 // pred_fallthru
      _
    // Predicated region
    $region26: #{tpu_custom_call.1} parent=1 // pred_check
      _
    $region27: #{tpu_custom_call.1} parent=1 // pred_check_branch
      %80 = sbr.rel (0) target = $region29
    $region28: #{tpu_custom_call.1} parent=1 // pred_region
      %81 = dma.done [#allocation7], 128
    $region29: #{tpu_custom_call.1} parent=1 // pred_fallthru
      _
    %82 = vsyncpa [#allocation3], 1
    %83 = vsyncpa [#allocation4], 1
    %84 = vsyncpa [#allocation7], 1

</llo_original>
